<compile_context>
chip_gen: v5e
topology: v5e:2x2
jax: 0.10.0
libtpu: 0.0.40
codegen_flags: <defaults>
</compile_context>

<pallas_src>
import jax
import jax.numpy as jnp
from jax.experimental import pallas as pl
from jax.experimental.pallas import tpu as pltpu

INPUT_SIZE = 20
H1 = 64
H2 = 32
BN_EPS = 1e-5
LANE = 128


def _round_up(n, m):
    return ((n + m - 1) // m) * m


def _cdiv(a, b):
    return -(-a // b)


# --------------------------------- kernel ------------------------------------

def floodpred_kernel(xT_ref, w1T_ref, w2T_ref, w3T_ref, b_ref, out_ref):
    """One batch tile, feature-major (features on sublanes, batch on lanes)."""
    xT = xT_ref[...]                                  # (20, TB) compute dtype
    b1 = b_ref[0:H1, :]                               # (64, 1)  f32
    b2 = b_ref[H1:H1 + H2, :]                         # (32, 1)  f32 (BN folded)
    b3 = b_ref[H1 + H2:H1 + H2 + 1, :]                # (1, 1)   f32

    # Linear(20,64) + ReLU   (bias column broadcasts along lanes; f32 accum)
    h = jnp.dot(w1T_ref[...], xT, preferred_element_type=jnp.float32) + b1
    h = jnp.maximum(h, 0.0).astype(w2T_ref.dtype)     # (64, TB)

    # BatchNorm1d(64) (eval) folded into W2/b2 host-side; Dropout(0.3) is
    # identity in eval mode.
    # TODO(synk): training-mode Dropout / batch-stat BatchNorm not implemented.

    # Linear(64,32) + ReLU  (BN-folded weights)
    h = jnp.dot(w2T_ref[...], h, preferred_element_type=jnp.float32) + b2
    h = jnp.maximum(h, 0.0).astype(w3T_ref.dtype)     # (32, TB)

    # Linear(32,1) -> naturally lane-dense (1, TB) row in this layout
    y = jnp.dot(w3T_ref[...], h, preferred_element_type=jnp.float32) + b3
    out_ref[...] = y.reshape(out_ref.shape).astype(out_ref.dtype)


# -------------------------------- wrappers ------------------------------------

def _choose_tiling(batch, max_tile_b):
    """Pick (TB, B_pad, num_tiles): TB a multiple of 128, padding waste bounded
    (~<=128 rows per tile), and >=2 tiles whenever possible so the 'parallel'
    batch axis can shard across v7x's two TensorCores."""
    max_tile_b = max(LANE, (max_tile_b // LANE) * LANE)
    b128 = _round_up(batch, LANE)
    num_tiles = _cdiv(b128, max_tile_b)
    if num_tiles == 1 and b128 >= 2 * LANE:
        num_tiles = 2
    tb = _round_up(_cdiv(batch, num_tiles), LANE)
    return tb, num_tiles * tb, num_tiles


def floodpred_forward_feature_major(xT, kernel_params, *, max_tile_b=8192):
    """xT: (20, B) feature-major input. Returns (B, 1) float32 predictions."""
    w1T, w2T, w3T, bias = kernel_params
    B = xT.shape[1]
    TB, B_pad, num_tiles = _choose_tiling(B, max_tile_b)
    xT = jnp.pad(xT, ((0, 0), (0, B_pad - B))).astype(w1T.dtype)

    const2 = lambda i: (0, 0)
    out = pl.pallas_call(
        floodpred_kernel,
        out_shape=jax.ShapeDtypeStruct((num_tiles, 1, TB), jnp.float32),
        grid=(num_tiles,),
        in_specs=[
            pl.BlockSpec((INPUT_SIZE, TB), lambda i: (0, i)),   # x^T tile (streamed)
            pl.BlockSpec((H1, INPUT_SIZE), const2),             # W1^T   (resident)
            pl.BlockSpec((H2, H1), const2),                     # W2'^T  (resident)
            pl.BlockSpec((1, H2), const2),                      # W3^T   (resident)
            pl.BlockSpec((H1 + H2 + 1, 1), const2),             # [b1; b2'; b3]
        ],
        out_specs=pl.BlockSpec((1, 1, TB), lambda i: (i, 0, 0)),
        compiler_params=pltpu.CompilerParams(
            dimension_semantics=("parallel",),
            vmem_limit_bytes=32 * 1024 * 1024),
    )(xT, w1T, w2T, w3T, bias)
    return out.reshape(B_pad, 1)[:B]


def floodpred_forward(x, kernel_params, *, max_tile_b=8192):
    """x: (B, 20). The transpose/pad/cast to feature-major fuses into a single
    HBM copy under jit; produce x^T upstream and use
    floodpred_forward_feature_major to avoid it entirely."""
    return floodpred_forward_feature_major(x.T, kernel_params,
                                           max_tile_b=max_tile_b)


# ----------------------------- parameter handling -----------------------------

def init_params(key):
    """PyTorch-style parameters. Weights stored (in_features, out_features)."""
    ks = jax.random.split(key, 10)
    w1 = jax.random.normal(ks[0], (INPUT_SIZE, H1), jnp.float32) / jnp.sqrt(INPUT_SIZE)
    b1 = jax.random.normal(ks[1], (1, H1), jnp.float32) * 0.01
    gamma = 1.0 + 0.1 * jax.random.normal(ks[2], (1, H1), jnp.float32)
    beta = 0.05 * jax.random.normal(ks[3], (1, H1), jnp.float32)
    rmean = 0.1 * jax.random.normal(ks[4], (1, H1), jnp.float32)
    rvar = jax.random.uniform(ks[5], (1, H1), jnp.float32, minval=0.5, maxval=1.5)
    w2 = jax.random.normal(ks[6], (H1, H2), jnp.float32) / jnp.sqrt(H1)
    b2 = jax.random.normal(ks[7], (1, H2), jnp.float32) * 0.01
    w3 = jax.random.normal(ks[8], (H2, 1), jnp.float32) / jnp.sqrt(H2)
    b3 = jax.random.normal(ks[9], (1, 1), jnp.float32) * 0.01
    return (w1, b1, gamma, beta, rmean, rvar, w2, b2, w3, b3)


def fold_bn(params):
    """Exactly fold eval-mode BatchNorm1d(64) into the following Linear(64,32)."""
    w1, b1, gamma, beta, rmean, rvar, w2, b2, w3, b3 = params
    s = gamma * jax.lax.rsqrt(rvar + BN_EPS)      # (1, 64)
    t = beta - rmean * s                          # (1, 64)
    w2f = w2 * s.reshape(H1, 1)                   # diag(s) @ W2
    b2f = t @ w2 + b2                             # t @ W2 + b2
    return (w1, b1, w2f, b2f, w3, b3)


def to_kernel_layout(folded, compute_dtype=jnp.bfloat16):
    """Transpose weights to feature-major, cast to the compute dtype, and pack
    the biases (kept f32, added to the f32 accumulators) into one column."""
    w1, b1, w2f, b2f, w3, b3 = folded
    bias = jnp.concatenate(
        [b1.reshape(H1, 1), b2f.reshape(H2, 1), b3.reshape(1, 1)],
        axis=0).astype(jnp.float32)                            # (97, 1)
    return (w1.T.astype(compute_dtype), w2f.T.astype(compute_dtype),
            w3.T.astype(compute_dtype), bias)


# --------------------------------- references ---------------------------------

def reference_forward(x, params, precision=None):
    """Literal PyTorch eval-mode forward (explicit BatchNorm, Dropout=identity)."""
    w1, b1, gamma, beta, rmean, rvar, w2, b2, w3, b3 = params
    h = jnp.maximum(jnp.dot(x, w1, precision=precision) + b1, 0.0)
    h = (h - rmean) / jnp.sqrt(rvar + BN_EPS) * gamma + beta
    h = jnp.maximum(jnp.dot(h, w2, precision=precision) + b2, 0.0)
    return jnp.dot(h, w3, precision=precision) + b3


def reference_forward_folded(x, folded, precision=None):
    """Same forward with BN folded into layer 2 (the math the kernel runs)."""
    w1, b1, w2f, b2f, w3, b3 = folded
    h = jnp.maximum(jnp.dot(x, w1, precision=precision) + b1, 0.0)
    h = jnp.maximum(jnp.dot(h, w2f, precision=precision) + b2f, 0.0)
    return jnp.dot(h, w3, precision=precision) + b3


def reference_forward_bf16(x, folded):
    """Mimics the kernel's default numerics: bf16 operands, f32 accumulation."""
    w1, b1, w2f, b2f, w3, b3 = folded
    bd = jnp.bfloat16
    h = jnp.dot(x.astype(bd), w1.astype(bd),
                preferred_element_type=jnp.float32) + b1
    h = jnp.maximum(h, 0.0).astype(bd)
    h = jnp.dot(h, w2f.astype(bd), preferred_element_type=jnp.float32) + b2f
    h = jnp.maximum(h, 0.0).astype(bd)
    return jnp.dot(h, w3.astype(bd), preferred_element_type=jnp.float32) + b3


# ----------------------------------- main --------------------------------------

if __name__ == "__main__":
    key = jax.random.PRNGKey(0)
    kx, kx2, kp = jax.random.split(key, 3)
    B = 8
    x = jax.random.normal(kx, (B, INPUT_SIZE), jnp.float32)

    params = init_params(kp)
    folded = fold_bn(params)

    # (1) BN folding is exact algebra (checked at full f32 matmul precision).
    hp = jax.lax.Precision.HIGHEST
    assert jnp.allclose(reference_forward(x, params, hp),
                        reference_forward_folded(x, folded, hp),
                        atol=1e-5, rtol=1e-5)

    # (2) Fast path: bf16 inputs/weights, f32 accumulation (perf default).
    kparams_bf16 = to_kernel_layout(folded, jnp.bfloat16)
    fwd = jax.jit(lambda xx: floodpred_forward(xx, kparams_bf16))
    out = jax.block_until_ready(fwd(x))
    assert out.shape == (B, 1)
    assert jnp.allclose(out, reference_forward_bf16(x, folded),
                        atol=1e-4, rtol=1e-4)
    assert jnp.allclose(out, reference_forward_folded(x, folded, hp),
                        atol=1e-1, rtol=1e-1)

    # (3) Exact-f32 path matches the folded reference at 1e-5.
    kparams_f32 = to_kernel_layout(folded, jnp.float32)
    out_f32 = jax.block_until_ready(floodpred_forward(x, kparams_f32))
    assert jnp.allclose(out_f32, reference_forward_folded(x, folded),
                        atol=1e-5, rtol=1e-5)

    # (4) Multi-tile + padding coverage: B=300 with a 128-wide tile cap ->
    #     3 grid steps and 84 padded batch rows.
    B2 = 300
    x2 = jax.random.normal(kx2, (B2, INPUT_SIZE), jnp.float32)
    out2 = jax.block_until_ready(
        floodpred_forward(x2, kparams_bf16, max_tile_b=128))
    assert out2.shape == (B2, 1)
    assert jnp.allclose(out2, reference_forward_bf16(x2, folded),
                        atol=1e-4, rtol=1e-4)

    print("KERNEL_OK")
</pallas_src>

<mosaic_0001>
module attributes {stable_mosaic.version = 11 : i64} {
  func.func @floodpred_kernel(%arg0: i32, %arg1: memref<20x128xbf16, #tpu.memory_space<vmem>>, %arg2: memref<64x20xbf16, #tpu.memory_space<vmem>>, %arg3: memref<32x64xbf16, #tpu.memory_space<vmem>>, %arg4: memref<1x32xbf16, #tpu.memory_space<vmem>>, %arg5: memref<97x1xf32, #tpu.memory_space<vmem>>, %arg6: memref<1x1x128xf32, #tpu.memory_space<vmem>>) attributes {dimension_semantics = [#tpu.dimension_semantics<parallel>], iteration_bounds = array<i64: 1>, scalar_prefetch = 0 : i64, scratch_operands = 0 : i64, tpu.core_type = #tpu.core_type<tc>, window_params = [{transform_indices = @transform_0, window_bounds = array<i64: 20, 128>}, {pipeline_mode = #tpu.pipeline_mode<synchronous>, transform_indices = @transform_1, window_bounds = array<i64: 64, 20>}, {pipeline_mode = #tpu.pipeline_mode<synchronous>, transform_indices = @transform_2, window_bounds = array<i64: 32, 64>}, {pipeline_mode = #tpu.pipeline_mode<synchronous>, transform_indices = @transform_3, window_bounds = array<i64: 1, 32>}, {pipeline_mode = #tpu.pipeline_mode<synchronous>, transform_indices = @transform_4, window_bounds = array<i64: 97, 1>}, {transform_indices = @transform_5, window_bounds = array<i64: 1, 1, 128>}]} {
    %c0 = arith.constant 0 : index
    %c0_0 = arith.constant 0 : index
    %0 = vector.load %arg1[%c0, %c0_0] : memref<20x128xbf16, #tpu.memory_space<vmem>>, vector<20x128xbf16>
    %c0_1 = arith.constant 0 : index
    %c0_2 = arith.constant 0 : index
    %1 = vector.load %arg5[%c0_1, %c0_2] : memref<97x1xf32, #tpu.memory_space<vmem>>, vector<64x1xf32>
    %c64 = arith.constant 64 : index
    %c0_3 = arith.constant 0 : index
    %2 = vector.load %arg5[%c64, %c0_3] : memref<97x1xf32, #tpu.memory_space<vmem>>, vector<32x1xf32>
    %c96 = arith.constant 96 : index
    %c0_4 = arith.constant 0 : index
    %3 = vector.load %arg5[%c96, %c0_4] : memref<97x1xf32, #tpu.memory_space<vmem>>, vector<1x1xf32>
    %c0_5 = arith.constant 0 : index
    %c0_6 = arith.constant 0 : index
    %4 = vector.load %arg2[%c0_5, %c0_6] : memref<64x20xbf16, #tpu.memory_space<vmem>>, vector<64x20xbf16>
    %cst = arith.constant dense<0.000000e+00> : vector<64x128xf32>
    %5 = tpu.matmul %4, %0, %cst {dimension_numbers = #tpu.dot_dimension_numbers<[1], [0], [0], [1], [0, 0, 1, 1], [], []>} : vector<64x20xbf16>, vector<20x128xbf16>, vector<64x128xf32> -> vector<64x128xf32>
    %6 = vector.broadcast %1 : vector<64x1xf32> to vector<64x128xf32>
    %7 = arith.addf %5, %6 : vector<64x128xf32>
    %cst_7 = arith.constant 0.000000e+00 : f32
    %8 = vector.broadcast %cst_7 : f32 to vector<64x128xf32>
    %9 = arith.maximumf %7, %8 : vector<64x128xf32>
    %10 = arith.truncf %9 : vector<64x128xf32> to vector<64x128xbf16>
    %c0_8 = arith.constant 0 : index
    %c0_9 = arith.constant 0 : index
    %11 = vector.load %arg3[%c0_8, %c0_9] : memref<32x64xbf16, #tpu.memory_space<vmem>>, vector<32x64xbf16>
    %cst_10 = arith.constant dense<0.000000e+00> : vector<32x128xf32>
    %12 = tpu.matmul %11, %10, %cst_10 {dimension_numbers = #tpu.dot_dimension_numbers<[1], [0], [0], [1], [0, 0, 1, 1], [], []>} : vector<32x64xbf16>, vector<64x128xbf16>, vector<32x128xf32> -> vector<32x128xf32>
    %13 = vector.broadcast %2 : vector<32x1xf32> to vector<32x128xf32>
    %14 = arith.addf %12, %13 : vector<32x128xf32>
    %cst_11 = arith.constant 0.000000e+00 : f32
    %15 = vector.broadcast %cst_11 : f32 to vector<32x128xf32>
    %16 = arith.maximumf %14, %15 : vector<32x128xf32>
    %17 = arith.truncf %16 : vector<32x128xf32> to vector<32x128xbf16>
    %c0_12 = arith.constant 0 : index
    %c0_13 = arith.constant 0 : index
    %18 = vector.load %arg4[%c0_12, %c0_13] : memref<1x32xbf16, #tpu.memory_space<vmem>>, vector<1x32xbf16>
    %cst_14 = arith.constant dense<0.000000e+00> : vector<1x128xf32>
    %19 = tpu.matmul %18, %17, %cst_14 {dimension_numbers = #tpu.dot_dimension_numbers<[1], [0], [0], [1], [0, 0, 1, 1], [], []>} : vector<1x32xbf16>, vector<32x128xbf16>, vector<1x128xf32> -> vector<1x128xf32>
    %20 = vector.broadcast %3 : vector<1x1xf32> to vector<1x128xf32>
    %21 = arith.addf %19, %20 : vector<1x128xf32>
    %22 = vector.shape_cast %21 : vector<1x128xf32> to vector<1x1x128xf32>
    %c0_15 = arith.constant 0 : index
    %c0_16 = arith.constant 0 : index
    %c0_17 = arith.constant 0 : index
    %23 = vector.load %arg6[%c0_15, %c0_16, %c0_17] : memref<1x1x128xf32, #tpu.memory_space<vmem>>, vector<1x1x128xf32>
    tpu.vector_store %arg6[%c0_15, %c0_16, %c0_17], %22 {strides = array<i32>} : memref<1x1x128xf32, #tpu.memory_space<vmem>>, vector<1x1x128xf32>,
    return
  }
  func.func @transform_0(%arg0: i32) -> (i32, i32) {
    %c0_i32 = arith.constant 0 : i32
    %c0_i32_0 = arith.constant 0 : i32
    return %c0_i32, %arg0 : i32, i32
  }
  func.func @transform_1(%arg0: i32) -> (i32, i32) {
    %c0_i32 = arith.constant 0 : i32
    %c0_i32_0 = arith.constant 0 : i32
    %c0_i32_1 = arith.constant 0 : i32
    return %c0_i32, %c0_i32_0 : i32, i32
  }
  func.func @transform_2(%arg0: i32) -> (i32, i32) {
    %c0_i32 = arith.constant 0 : i32
    %c0_i32_0 = arith.constant 0 : i32
    %c0_i32_1 = arith.constant 0 : i32
    return %c0_i32, %c0_i32_0 : i32, i32
  }
  func.func @transform_3(%arg0: i32) -> (i32, i32) {
    %c0_i32 = arith.constant 0 : i32
    %c0_i32_0 = arith.constant 0 : i32
    %c0_i32_1 = arith.constant 0 : i32
    return %c0_i32, %c0_i32_0 : i32, i32
  }
  func.func @transform_4(%arg0: i32) -> (i32, i32) {
    %c0_i32 = arith.constant 0 : i32
    %c0_i32_0 = arith.constant 0 : i32
    %c0_i32_1 = arith.constant 0 : i32
    return %c0_i32, %c0_i32_0 : i32, i32
  }
  func.func @transform_5(%arg0: i32) -> (i32, i32, i32) {
    %c0_i32 = arith.constant 0 : i32
    %c0_i32_0 = arith.constant 0 : i32
    %c0_i32_1 = arith.constant 0 : i32
    return %arg0, %c0_i32, %c0_i32_0 : i32, i32, i32
  }
}

</mosaic_0001>

<llo_original>
// kernel: _lambda_.1
$region0: #{_lambda_.1}
  #allocation0 [shape = 'u32[]', space=smem, size = 0x4, offset = 0x4, fixed_abs, tag = 'smem constant byte address 0x4 - core index']
  #allocation1 [shape = 'u32[72,128]{1,0:T(1,128)}', space=vmem, size = 0x9000, scoped, tag = 'internal scratch']
  %s0 = inlined_call_operand.vmem [shape: bf16[20,128], index: 0, kind: input, shape index: {}]
  %s1 = inlined_call_operand.vmem [shape: bf16[64,20], index: 1, kind: input, shape index: {}]
  %s2 = inlined_call_operand.vmem [shape: bf16[32,64], index: 2, kind: input, shape index: {}]
  %s3 = inlined_call_operand.vmem [shape: bf16[1,32], index: 3, kind: input, shape index: {}]
  %s4 = inlined_call_operand.hbm [shape: f32[97,1], index: 4, kind: input, shape index: {}]
  %s5 = inlined_call_operand.vmem [shape: f32[1,1,128], index: 5, kind: output, shape index: {}]
  %s6 = sld [smem:[#allocation0]]
  $region34: #{_lambda_.1} parent=0
    _
  %s8 = ssub.s32 1, %s6
  %s9 = scalar_select 0, %s8, %s6
  $region1: #{_lambda_.1} parent=0
    #allocation2 [shape = 'u8[53248]{0}', space=vmem, size = 0xd000, scoped, tag = 'input window, operand 4, single buffered']
    #allocation3 [shape = 's32[1]{0}', space=sflag, size = 0x4, scoped, tag = 'scoped memory for _lambda_.1']
    %10 = vsyncpa [#allocation3], 0
    // Predicated region
    $region2: #{_lambda_.1} parent=1 // pred_check
      _
    $region3: #{_lambda_.1} parent=1 // pred_check_branch
      %12 = sbr.rel (0) target = $region5
    $region4: #{_lambda_.1} parent=1 // pred_region
      _
    $region5: #{_lambda_.1} parent=1 // pred_fallthru
      _
    // Predicated region
    $region6: #{_lambda_.1} parent=1 // pred_check
      _
    $region7: #{_lambda_.1} parent=1 // pred_check_branch
      %14 = sbr.rel (0) target = $region9
    $region8: #{_lambda_.1} parent=1 // pred_region
      _
    $region9: #{_lambda_.1} parent=1 // pred_fallthru
      _
    // Predicated region
    $region10: #{_lambda_.1} parent=1 // pred_check
      _
    $region11: #{_lambda_.1} parent=1 // pred_check_branch
      %16 = sbr.rel (0) target = $region13
    $region12: #{_lambda_.1} parent=1 // pred_region
      _
    $region13: #{_lambda_.1} parent=1 // pred_fallthru
      _
    // Predicated region
    $region14: #{_lambda_.1} parent=1 // pred_check
      _
    $region15: #{_lambda_.1} parent=1 // pred_check_branch
      %18 = sbr.rel (0) target = $region17
    $region16: #{_lambda_.1} parent=1 // pred_region
      _
    $region17: #{_lambda_.1} parent=1 // pred_fallthru
      _
    // Predicated region
    $region18: #{_lambda_.1} parent=1 // pred_check
      _
    $region19: #{_lambda_.1} parent=1 // pred_check_branch
      %20 = sbr.rel (0) target = $region21
    $region20: #{_lambda_.1} parent=1 // pred_region
      %22 = vsyncadd [#allocation3], 0
      %s23 = sshll.u32 %s4, 4
      %s24 = int_to_ptr.hbm [resolvable:$true] %s23
      %s25 = sshll.u32 [#allocation2], 4
      %s26 = int_to_ptr.vmem [resolvable:$true] %s25
      %31 = dma.hbm_to_vmem [thread:$0]  %s24, 1664, %s26, [#allocation3], 128, 128, 8
    $region21: #{_lambda_.1} parent=1 // pred_fallthru
      _
    // Predicated region
    $region22: #{_lambda_.1} parent=1 // pred_check
      _
    $region23: #{_lambda_.1} parent=1 // pred_check_branch
      %33 = sbr.rel (0) target = $region25
    $region24: #{_lambda_.1} parent=1 // pred_region
      %35 = dma.done [#allocation3], 1664
    $region25: #{_lambda_.1} parent=1 // pred_fallthru
      _
    %v37 = vld [vmem:[%s0] sm:$0xf]
    %v38 = vld [vmem:[%s0 + $0x4] sm:$0xf]
    %v39 = vld [vmem:[%s0 + $0x8] sm:$0x3]
    %v40 = vld [vmem:[#allocation2] sm:$0xff]
    %v41 = vld [vmem:[#allocation2 + $0x8] sm:$0xff]
    %v42 = vld [vmem:[#allocation2 + $0x10] sm:$0xff]
    %v43 = vld [vmem:[#allocation2 + $0x18] sm:$0xff]
    %v44 = vld [vmem:[#allocation2 + $0x20] sm:$0xff]
    %v45 = vld [vmem:[#allocation2 + $0x28] sm:$0xff]
    %v46 = vld [vmem:[#allocation2 + $0x30] sm:$0xff]
    %v47 = vld [vmem:[#allocation2 + $0x38] sm:$0xff]
    %v48 = vld [vmem:[#allocation2 + $0x40] sm:$0xff]
    %v49 = vld [vmem:[#allocation2 + $0x48] sm:$0xff]
    %v50 = vld [vmem:[#allocation2 + $0x50] sm:$0xff]
    %v51 = vld [vmem:[#allocation2 + $0x58] sm:$0xff]
    %v52 = vld [vmem:[#allocation2 + $0x60] sm:$0x1]
    %v53 = vld [vmem:[%s1] sm:$0xf]
    %v54 = vld [vmem:[%s1 + $0x4] sm:$0xf]
    %v55 = vld [vmem:[%s1 + $0x8] sm:$0xf]
    %v56 = vld [vmem:[%s1 + $0xc] sm:$0xf]
    %v57 = vld [vmem:[%s1 + $0x10] sm:$0xf]
    %v58 = vld [vmem:[%s1 + $0x14] sm:$0xf]
    %v59 = vld [vmem:[%s1 + $0x18] sm:$0xf]
    %v60 = vld [vmem:[%s1 + $0x1c] sm:$0xf]
    %62 = vset.pattern.permute.xlu0 0
    %63 = vperm.xlu0 %62, %v40
    %v64 = vpop.permute.xlu0 %63
    %67 = vset.pattern.permute.xlu0 0
    %68 = vperm.xlu0 %67, %v41
    %v69 = vpop.permute.xlu0 %68
    %72 = vset.pattern.permute.xlu0 0
    %73 = vperm.xlu0 %72, %v42
    %v74 = vpop.permute.xlu0 %73
    %77 = vset.pattern.permute.xlu0 0
    %78 = vperm.xlu0 %77, %v43
    %v79 = vpop.permute.xlu0 %78
    %82 = vset.pattern.permute.xlu0 0
    %83 = vperm.xlu0 %82, %v44
    %v84 = vpop.permute.xlu0 %83
    %87 = vset.pattern.permute.xlu0 0
    %88 = vperm.xlu0 %87, %v45
    %v89 = vpop.permute.xlu0 %88
    %92 = vset.pattern.permute.xlu0 0
    %93 = vperm.xlu0 %92, %v46
    %v94 = vpop.permute.xlu0 %93
    %97 = vset.pattern.permute.xlu0 0
    %98 = vperm.xlu0 %97, %v47
    %v99 = vpop.permute.xlu0 %98
    %v109 = vunpack.c.l.b16 %v53
    %v110 = vunpack.c.l.b16 %v54
    %v111 = vunpack.c.l.b16 %v55
    %v112 = vunpack.c.l.b16 %v56
    %v113 = vunpack.c.l.b16 %v57
    %v114 = vunpack.c.l.b16 %v58
    %v115 = vunpack.c.l.b16 %v59
    %v116 = vunpack.c.l.b16 %v60
    %v117 = vpack.c.b16 %v110, %v109
    %v118 = vpack.c.b16 %v112, %v111
    %v119 = vpack.c.b16 %v114, %v113
    %v120 = vpack.c.b16 %v116, %v115
    %v124 = vunpack.c.l.b16 %v37
    %v125 = vunpack.c.l.b16 %v38
    %v126 = vunpack.c.l.b16 %v39
    %v127 = vpack.c.b16 %v125, %v124
    %v128 = vpack.c.b16 %v126, %v126
    %vm130 = vcmask 162816
    %v132 = vsel %vm130, %v117, 0
    %v135 = vsel %vm130, %v118, 0
    %v138 = vsel %vm130, %v119, 0
    %v141 = vsel %vm130, %v120, 0
    %vm143 = vcmask 1041408
    %v145 = vsel %vm143, %v128, 0
    %147 = vmatpush.bf16.msra.mxu0 0
    %148 = vmatpush.bf16.msra.mxu0 0
    %149 = vmatpush.bf16.msra.mxu0 0
    %150 = vmatpush.bf16.msra.mxu0 0
    %151 = vmatpush.bf16.msra.mxu0 0
    %152 = vmatpush.bf16.msra.mxu0 0
    %153 = vmatpush.bf16.msra.mxu0 %v145
    %154 = vmatpush.bf16.msra.mxu0 %v127
    %155 = vmatmul.bf16.gmra.mxu0 %v132
    %v156 = vpop.f32.mrf.mxu0
    %v157 = vadd.f32 %v64, %v156
    %v158 = vpop.f32.mrf.mxu0
    %v159 = vadd.f32 %v69, %v158
    %160 = vmatmul.bf16.gmra.mxu0 %v135
    %v161 = vpop.f32.mrf.mxu0
    %v162 = vadd.f32 %v74, %v161
    %v163 = vpop.f32.mrf.mxu0
    %v164 = vadd.f32 %v79, %v163
    %165 = vmatmul.bf16.gmra.mxu0 %v138
    %v166 = vpop.f32.mrf.mxu0
    %v167 = vadd.f32 %v84, %v166
    %v168 = vpop.f32.mrf.mxu0
    %v169 = vadd.f32 %v89, %v168
    %170 = vmatmul.bf16.gmra.mxu0 %v141
    %v171 = vpop.f32.mrf.mxu0
    %v172 = vadd.f32 %v94, %v171
    %v173 = vpop.f32.mrf.mxu0
    %v174 = vadd.f32 %v99, %v173
    %175 = vdwg.mxu0
    %v176 = vmax.f32 %v157, 0.0
    %v177 = vmax.f32 %v159, 0.0
    %v178 = vmax.f32 %v162, 0.0
    %v179 = vmax.f32 %v164, 0.0
    %v180 = vmax.f32 %v167, 0.0
    %v181 = vmax.f32 %v169, 0.0
    %v182 = vmax.f32 %v172, 0.0
    %v183 = vmax.f32 %v174, 0.0
    %v184 = vpack.c.bf16 %v177, %v176
    %v185 = vpack.c.bf16 %v179, %v178
    %v186 = vpack.c.bf16 %v181, %v180
    %v187 = vpack.c.bf16 %v183, %v182
    %v188 = vld [vmem:[%s2] sm:$0xf]
    %v189 = vld [vmem:[%s2 + $0x4] sm:$0xf]
    %v190 = vld [vmem:[%s2 + $0x8] sm:$0xf]
    %v191 = vld [vmem:[%s2 + $0xc] sm:$0xf]
    %193 = vset.pattern.permute.xlu0 0
    %194 = vperm.xlu0 %193, %v48
    %v195 = vpop.permute.xlu0 %194
    %198 = vset.pattern.permute.xlu0 0
    %199 = vperm.xlu0 %198, %v49
    %v200 = vpop.permute.xlu0 %199
    %203 = vset.pattern.permute.xlu0 0
    %204 = vperm.xlu0 %203, %v50
    %v205 = vpop.permute.xlu0 %204
    %208 = vset.pattern.permute.xlu0 0
    %209 = vperm.xlu0 %208, %v51
    %v210 = vpop.permute.xlu0 %209
    %v216 = vunpack.c.l.b16 %v188
    %v217 = vunpack.c.l.b16 %v189
    %v218 = vunpack.c.l.b16 %v190
    %v219 = vunpack.c.l.b16 %v191
    %v220 = vpack.c.b16 %v217, %v216
    %v221 = vpack.c.b16 %v219, %v218
    %vm222 = vcmask 523264
    %v224 = vsel %vm222, %v220, 0
    %v227 = vsel %vm222, %v221, 0
    %229 = vmatpush.bf16.msra.mxu0 0
    %230 = vmatpush.bf16.msra.mxu0 0
    %231 = vmatpush.bf16.msra.mxu0 0
    %232 = vmatpush.bf16.msra.mxu0 0
    %233 = vmatpush.bf16.msra.mxu0 %v187
    %234 = vmatpush.bf16.msra.mxu0 %v186
    %235 = vmatpush.bf16.msra.mxu0 %v185
    %236 = vmatpush.bf16.msra.mxu0 %v184
    %237 = vmatmul.bf16.gmra.mxu0 %v224
    %v238 = vpop.f32.mrf.mxu0
    %v239 = vadd.f32 %v195, %v238
    %v240 = vpop.f32.mrf.mxu0
    %v241 = vadd.f32 %v200, %v240
    %242 = vmatmul.bf16.gmra.mxu0 %v227
    %v243 = vpop.f32.mrf.mxu0
    %v244 = vadd.f32 %v205, %v243
    %v245 = vpop.f32.mrf.mxu0
    %v246 = vadd.f32 %v210, %v245
    %247 = vdwg.mxu0
    %v248 = vmax.f32 %v239, 0.0
    %v249 = vmax.f32 %v241, 0.0
    %v250 = vmax.f32 %v244, 0.0
    %v251 = vmax.f32 %v246, 0.0
    %v252 = vpack.c.bf16 %v249, %v248
    %v253 = vpack.c.bf16 %v251, %v250
    %v254 = vld [vmem:[%s3] sm:$0x1]
    %256 = vset.pattern.permute.xlu0 0
    %257 = vperm.xlu0 %256, %v52
    %v258 = vpop.permute.xlu0 %257
    %vm260 = vcmask 261120
    %v262 = vsel %vm260, %v254, 0
    %264 = vmatpush.bf16.msra.mxu0 0
    %265 = vmatpush.bf16.msra.mxu0 0
    %266 = vmatpush.bf16.msra.mxu0 0
    %267 = vmatpush.bf16.msra.mxu0 0
    %268 = vmatpush.bf16.msra.mxu0 0
    %269 = vmatpush.bf16.msra.mxu0 0
    %270 = vmatpush.bf16.msra.mxu0 %v253
    %271 = vmatpush.bf16.msra.mxu0 %v252
    %272 = vmatmul.bf16.gmra.mxu0 %v262
    %v273 = vpop.f32.mrf.mxu0
    %v274 = vadd.f32 %v258, %v273
    %v275 = vpop.f32.mrf.mxu0
    %276 = vdwg.mxu0
    %277 = vst [vmem:[%s5] sm:$0x1] %v274
    // Predicated region
    $region26: #{_lambda_.1} parent=1 // pred_check
      _
    $region27: #{_lambda_.1} parent=1 // pred_check_branch
      %279 = sbr.rel (0) target = $region29
    $region28: #{_lambda_.1} parent=1 // pred_region
      _
    $region29: #{_lambda_.1} parent=1 // pred_fallthru
      _
    // Predicated region
    $region30: #{_lambda_.1} parent=1 // pred_check
      _
    $region31: #{_lambda_.1} parent=1 // pred_check_branch
      %281 = sbr.rel (0) target = $region33
    $region32: #{_lambda_.1} parent=1 // pred_region
      _
    $region33: #{_lambda_.1} parent=1 // pred_fallthru
      _
    %282 = vsyncpa [#allocation3], 1

</llo_original>
